<compile_context>
chip_gen: v5e
topology: v5e:2x2
jax: 0.10.0
libtpu: 0.0.40
codegen_flags: <defaults>
</compile_context>

<pallas_src>
import jax
import jax.numpy as jnp
from jax.experimental import pallas as pl
from jax.experimental.pallas import tpu as pltpu

_LANES = 128
_SUBLANES = 8
_NCORES = 2        # row split across 2 TCs (v7x); plain serial loop on v5e/v6e
_TM_MAX = 2048     # 2048 * 128 * 4B = 1 MiB per input tile (fits all VMEM budgets)


def _cdiv(a, b):
    return -(-a // b)


def _round_up(v, m):
    return ((v + m - 1) // m) * m


def _moment_kernel(x_ref, y_ref, o_ref):
    """Accumulate 5 raw-moment partial sums for one (tm, 128) tile.

    o_ref block is (1, 5, 8, 128): slabs 0..4 hold per-(sublane, lane) partial
    sums of x, y, x*x, y*y, x*y.  The zero-padded tail contributes nothing.
    """
    t = pl.program_id(1)

    @pl.when(t == 0)
    def _():
        o_ref[...] = jnp.zeros_like(o_ref)

    x = x_ref[...].astype(jnp.float32)          # (tm, 128) — cast per tile
    y = y_ref[...].astype(jnp.float32)
    tm = x.shape[0]
    xr = x.reshape(tm // _SUBLANES, _SUBLANES, _LANES)   # sublane-group split (free)
    yr = y.reshape(tm // _SUBLANES, _SUBLANES, _LANES)

    o_ref[0, 0, :, :] += jnp.sum(xr, axis=0)
    o_ref[0, 1, :, :] += jnp.sum(yr, axis=0)
    o_ref[0, 2, :, :] += jnp.sum(xr * xr, axis=0)
    o_ref[0, 3, :, :] += jnp.sum(yr * yr, axis=0)
    o_ref[0, 4, :, :] += jnp.sum(xr * yr, axis=0)


def my_loss(out_1, out_2, lr):
    """JAX/Pallas equivalent of MyLoss(lr).forward(out_1, out_2)."""
    assert out_1.shape == out_2.shape, "inputs must have identical shapes"
    n = out_1.size
    x = out_1.reshape(-1)
    y = out_2.reshape(-1)

    # Lane/sublane-dense layout: pad flat arrays with zeros to a whole number
    # of (tm, 128) tiles split evenly across _NCORES.
    rows = _cdiv(n, _LANES)
    rows_per_core = _cdiv(rows, _NCORES)
    tm = min(_TM_MAX, _round_up(rows_per_core, _SUBLANES))
    tiles_per_core = _cdiv(rows_per_core, tm)
    padded_rows = _NCORES * tiles_per_core * tm
    padded_n = padded_rows * _LANES
    if padded_n != n:
        x = jnp.pad(x, (0, padded_n - n))
        y = jnp.pad(y, (0, padded_n - n))
    x2 = x.reshape(padded_rows, _LANES)
    y2 = y.reshape(padded_rows, _LANES)

    tile_bytes = tm * _LANES * x2.dtype.itemsize
    # 2 inputs x 2 pipeline buffers, with generous headroom for internal scratch.
    vmem_limit = int(min(64 << 20, max(16 << 20, 8 * tile_bytes + (2 << 20))))

    in_map = lambda c, t: (c * tiles_per_core + t, 0)
    partials = pl.pallas_call(
        _moment_kernel,
        out_shape=jax.ShapeDtypeStruct(
            (_NCORES, 5, _SUBLANES, _LANES), jnp.float32),
        grid=(_NCORES, tiles_per_core),
        in_specs=[
            pl.BlockSpec((tm, _LANES), in_map),
            pl.BlockSpec((tm, _LANES), in_map),
        ],
        out_specs=pl.BlockSpec((1, 5, _SUBLANES, _LANES),
                               lambda c, t: (c, 0, 0, 0)),
        compiler_params=pltpu.CompilerParams(
            dimension_semantics=("parallel", "arbitrary"),
            vmem_limit_bytes=vmem_limit,
        ),
    )(x2, y2)

    # Tiny epilogue in plain JAX: combine per-core/per-lane partials and apply
    # the raw-moment Pearson formula with the TRUE element count.
    # TODO(synk): raw-moment form is not bit-identical to the two-pass
    # mean->center->sum order of the PyTorch module (f32-accurate in practice).
    sums = jnp.sum(partials, axis=(0, 2, 3))  # (5,)
    sx, sy, sxx, syy, sxy = sums[0], sums[1], sums[2], sums[3], sums[4]
    nf = jnp.float32(n)
    cov = sxy - sx * sy / nf
    var_x = sxx - sx * sx / nf
    var_y = syy - sy * sy / nf
    corr = cov / jnp.sqrt(var_x * var_y)
    return (jnp.float32(1.0) - corr) * lr


def _reference_loss(out_1, out_2, lr):
    x = out_1.astype(jnp.float32)
    y = out_2.astype(jnp.float32)
    mean_1 = jnp.mean(x)
    mean_2 = jnp.mean(y)
    g1 = x - mean_1
    g2 = y - mean_2
    norm = jnp.sum(g1 * g2)
    sq_1 = jnp.sqrt(jnp.sum(g1 * g1))
    sq_2 = jnp.sqrt(jnp.sum(g2 * g2))
    return (1.0 - norm / (sq_1 * sq_2)) * lr


if __name__ == "__main__":
    key = jax.random.PRNGKey(0)
    k1, k2 = jax.random.split(key)
    # Small shapes consistent with the module (it accepts arbitrary tensors).
    out_1 = jax.random.normal(k1, (2, 4, 16, 16), dtype=jnp.float32)
    # Correlated-but-noisy second input so the loss is nontrivial.
    out_2 = 0.7 * out_1 + 0.3 * jax.random.normal(k2, (2, 4, 16, 16),
                                                  dtype=jnp.float32)
    lr = 0.5

    res = my_loss(out_1, out_2, lr)
    jax.block_until_ready(res)

    ref = _reference_loss(out_1, out_2, lr)
    assert abs(float(res) - float(ref)) < 1e-4, (float(res), float(ref))
    print("KERNEL_OK")
</pallas_src>

<mosaic_0001>
module attributes {stable_mosaic.version = 11 : i64} {
  func.func @_moment_kernel(%arg0: i32, %arg1: i32, %arg2: memref<8x128xf32, #tpu.memory_space<vmem>>, %arg3: memref<8x128xf32, #tpu.memory_space<vmem>>, %arg4: memref<1x5x8x128xf32, #tpu.memory_space<vmem>>) attributes {dimension_semantics = [#tpu.dimension_semantics<parallel>, #tpu.dimension_semantics<arbitrary>], iteration_bounds = array<i64: 2, 1>, scalar_prefetch = 0 : i64, scratch_operands = 0 : i64, tpu.core_type = #tpu.core_type<tc>, window_params = [{transform_indices = @transform_0, window_bounds = array<i64: 8, 128>}, {transform_indices = @transform_1, window_bounds = array<i64: 8, 128>}, {transform_indices = @transform_2, window_bounds = array<i64: 1, 5, 8, 128>}]} {
    %c0_i32 = arith.constant 0 : i32
    %0 = arith.cmpi eq, %arg1, %c0_i32 : i32
    %1 = arith.extui %0 : i1 to i32
    %c0_i32_0 = arith.constant 0 : i32
    %2 = arith.cmpi ne, %1, %c0_i32_0 : i32
    scf.if %2 {
      %cst_44 = arith.constant 0.000000e+00 : f32
      %45 = vector.broadcast %cst_44 : f32 to vector<1x5x8x128xf32>
      %c0_45 = arith.constant 0 : index
      %c0_46 = arith.constant 0 : index
      %c0_47 = arith.constant 0 : index
      %c0_48 = arith.constant 0 : index
      %46 = vector.load %arg4[%c0_45, %c0_46, %c0_47, %c0_48] : memref<1x5x8x128xf32, #tpu.memory_space<vmem>>, vector<1x5x8x128xf32>
      tpu.vector_store %arg4[%c0_45, %c0_46, %c0_47, %c0_48], %45 {strides = array<i32>} : memref<1x5x8x128xf32, #tpu.memory_space<vmem>>, vector<1x5x8x128xf32>,
    } else {
    }
    %c0 = arith.constant 0 : index
    %c0_1 = arith.constant 0 : index
    %3 = vector.load %arg2[%c0, %c0_1] : memref<8x128xf32, #tpu.memory_space<vmem>>, vector<8x128xf32>
    %c0_2 = arith.constant 0 : index
    %c0_3 = arith.constant 0 : index
    %4 = vector.load %arg3[%c0_2, %c0_3] : memref<8x128xf32, #tpu.memory_space<vmem>>, vector<8x128xf32>
    %5 = vector.shape_cast %3 : vector<8x128xf32> to vector<1x8x128xf32>
    %6 = vector.shape_cast %4 : vector<8x128xf32> to vector<1x8x128xf32>
    %c0_4 = arith.constant 0 : index
    %c0_5 = arith.constant 0 : index
    %c0_6 = arith.constant 0 : index
    %c0_7 = arith.constant 0 : index
    %7 = vector.load %arg4[%c0_4, %c0_5, %c0_6, %c0_7] : memref<1x5x8x128xf32, #tpu.memory_space<vmem>>, vector<1x1x8x128xf32>
    %8 = vector.shape_cast %7 : vector<1x1x8x128xf32> to vector<8x128xf32>
    %cst = arith.constant dense<0.000000e+00> : vector<8x128xf32>
    %9 = vector.multi_reduction <add>, %5, %cst [0] : vector<1x8x128xf32> to vector<8x128xf32>
    %10 = arith.addf %8, %9 : vector<8x128xf32>
    %c0_8 = arith.constant 0 : index
    %c0_9 = arith.constant 0 : index
    %c0_10 = arith.constant 0 : index
    %c0_11 = arith.constant 0 : index
    %11 = vector.load %arg4[%c0_8, %c0_9, %c0_10, %c0_11] : memref<1x5x8x128xf32, #tpu.memory_space<vmem>>, vector<1x1x8x128xf32>
    %12 = vector.shape_cast %11 : vector<1x1x8x128xf32> to vector<8x128xf32>
    %13 = vector.shape_cast %10 : vector<8x128xf32> to vector<1x1x8x128xf32>
    tpu.vector_store %arg4[%c0_8, %c0_9, %c0_10, %c0_11], %13 {strides = array<i32>} : memref<1x5x8x128xf32, #tpu.memory_space<vmem>>, vector<1x1x8x128xf32>,
    %c0_12 = arith.constant 0 : index
    %c1 = arith.constant 1 : index
    %c0_13 = arith.constant 0 : index
    %c0_14 = arith.constant 0 : index
    %14 = vector.load %arg4[%c0_12, %c1, %c0_13, %c0_14] : memref<1x5x8x128xf32, #tpu.memory_space<vmem>>, vector<1x1x8x128xf32>
    %15 = vector.shape_cast %14 : vector<1x1x8x128xf32> to vector<8x128xf32>
    %cst_15 = arith.constant dense<0.000000e+00> : vector<8x128xf32>
    %16 = vector.multi_reduction <add>, %6, %cst_15 [0] : vector<1x8x128xf32> to vector<8x128xf32>
    %17 = arith.addf %15, %16 : vector<8x128xf32>
    %c0_16 = arith.constant 0 : index
    %c1_17 = arith.constant 1 : index
    %c0_18 = arith.constant 0 : index
    %c0_19 = arith.constant 0 : index
    %18 = vector.load %arg4[%c0_16, %c1_17, %c0_18, %c0_19] : memref<1x5x8x128xf32, #tpu.memory_space<vmem>>, vector<1x1x8x128xf32>
    %19 = vector.shape_cast %18 : vector<1x1x8x128xf32> to vector<8x128xf32>
    %20 = vector.shape_cast %17 : vector<8x128xf32> to vector<1x1x8x128xf32>
    tpu.vector_store %arg4[%c0_16, %c1_17, %c0_18, %c0_19], %20 {strides = array<i32>} : memref<1x5x8x128xf32, #tpu.memory_space<vmem>>, vector<1x1x8x128xf32>,
    %c0_20 = arith.constant 0 : index
    %c2 = arith.constant 2 : index
    %c0_21 = arith.constant 0 : index
    %c0_22 = arith.constant 0 : index
    %21 = vector.load %arg4[%c0_20, %c2, %c0_21, %c0_22] : memref<1x5x8x128xf32, #tpu.memory_space<vmem>>, vector<1x1x8x128xf32>
    %22 = vector.shape_cast %21 : vector<1x1x8x128xf32> to vector<8x128xf32>
    %23 = arith.mulf %5, %5 : vector<1x8x128xf32>
    %cst_23 = arith.constant dense<0.000000e+00> : vector<8x128xf32>
    %24 = vector.multi_reduction <add>, %23, %cst_23 [0] : vector<1x8x128xf32> to vector<8x128xf32>
    %25 = arith.addf %22, %24 : vector<8x128xf32>
    %c0_24 = arith.constant 0 : index
    %c2_25 = arith.constant 2 : index
    %c0_26 = arith.constant 0 : index
    %c0_27 = arith.constant 0 : index
    %26 = vector.load %arg4[%c0_24, %c2_25, %c0_26, %c0_27] : memref<1x5x8x128xf32, #tpu.memory_space<vmem>>, vector<1x1x8x128xf32>
    %27 = vector.shape_cast %26 : vector<1x1x8x128xf32> to vector<8x128xf32>
    %28 = vector.shape_cast %25 : vector<8x128xf32> to vector<1x1x8x128xf32>
    tpu.vector_store %arg4[%c0_24, %c2_25, %c0_26, %c0_27], %28 {strides = array<i32>} : memref<1x5x8x128xf32, #tpu.memory_space<vmem>>, vector<1x1x8x128xf32>,
    %c0_28 = arith.constant 0 : index
    %c3 = arith.constant 3 : index
    %c0_29 = arith.constant 0 : index
    %c0_30 = arith.constant 0 : index
    %29 = vector.load %arg4[%c0_28, %c3, %c0_29, %c0_30] : memref<1x5x8x128xf32, #tpu.memory_space<vmem>>, vector<1x1x8x128xf32>
    %30 = vector.shape_cast %29 : vector<1x1x8x128xf32> to vector<8x128xf32>
    %31 = arith.mulf %6, %6 : vector<1x8x128xf32>
    %cst_31 = arith.constant dense<0.000000e+00> : vector<8x128xf32>
    %32 = vector.multi_reduction <add>, %31, %cst_31 [0] : vector<1x8x128xf32> to vector<8x128xf32>
    %33 = arith.addf %30, %32 : vector<8x128xf32>
    %c0_32 = arith.constant 0 : index
    %c3_33 = arith.constant 3 : index
    %c0_34 = arith.constant 0 : index
    %c0_35 = arith.constant 0 : index
    %34 = vector.load %arg4[%c0_32, %c3_33, %c0_34, %c0_35] : memref<1x5x8x128xf32, #tpu.memory_space<vmem>>, vector<1x1x8x128xf32>
    %35 = vector.shape_cast %34 : vector<1x1x8x128xf32> to vector<8x128xf32>
    %36 = vector.shape_cast %33 : vector<8x128xf32> to vector<1x1x8x128xf32>
    tpu.vector_store %arg4[%c0_32, %c3_33, %c0_34, %c0_35], %36 {strides = array<i32>} : memref<1x5x8x128xf32, #tpu.memory_space<vmem>>, vector<1x1x8x128xf32>,
    %c0_36 = arith.constant 0 : index
    %c4 = arith.constant 4 : index
    %c0_37 = arith.constant 0 : index
    %c0_38 = arith.constant 0 : index
    %37 = vector.load %arg4[%c0_36, %c4, %c0_37, %c0_38] : memref<1x5x8x128xf32, #tpu.memory_space<vmem>>, vector<1x1x8x128xf32>
    %38 = vector.shape_cast %37 : vector<1x1x8x128xf32> to vector<8x128xf32>
    %39 = arith.mulf %5, %6 : vector<1x8x128xf32>
    %cst_39 = arith.constant dense<0.000000e+00> : vector<8x128xf32>
    %40 = vector.multi_reduction <add>, %39, %cst_39 [0] : vector<1x8x128xf32> to vector<8x128xf32>
    %41 = arith.addf %38, %40 : vector<8x128xf32>
    %c0_40 = arith.constant 0 : index
    %c4_41 = arith.constant 4 : index
    %c0_42 = arith.constant 0 : index
    %c0_43 = arith.constant 0 : index
    %42 = vector.load %arg4[%c0_40, %c4_41, %c0_42, %c0_43] : memref<1x5x8x128xf32, #tpu.memory_space<vmem>>, vector<1x1x8x128xf32>
    %43 = vector.shape_cast %42 : vector<1x1x8x128xf32> to vector<8x128xf32>
    %44 = vector.shape_cast %41 : vector<8x128xf32> to vector<1x1x8x128xf32>
    tpu.vector_store %arg4[%c0_40, %c4_41, %c0_42, %c0_43], %44 {strides = array<i32>} : memref<1x5x8x128xf32, #tpu.memory_space<vmem>>, vector<1x1x8x128xf32>,
    return
  }
  func.func @transform_0(%arg0: i32, %arg1: i32) -> (i32, i32) {
    %c1_i32 = arith.constant 1 : i32
    %0 = arith.muli %arg0, %c1_i32 : i32
    %1 = arith.addi %0, %arg1 : i32
    %c0_i32 = arith.constant 0 : i32
    %c0_i32_0 = arith.constant 0 : i32
    return %1, %c0_i32 : i32, i32
  }
  func.func @transform_1(%arg0: i32, %arg1: i32) -> (i32, i32) {
    %c1_i32 = arith.constant 1 : i32
    %0 = arith.muli %arg0, %c1_i32 : i32
    %1 = arith.addi %0, %arg1 : i32
    %c0_i32 = arith.constant 0 : i32
    %c0_i32_0 = arith.constant 0 : i32
    return %1, %c0_i32 : i32, i32
  }
  func.func @transform_2(%arg0: i32, %arg1: i32) -> (i32, i32, i32, i32) {
    %c0_i32 = arith.constant 0 : i32
    %c0_i32_0 = arith.constant 0 : i32
    %c0_i32_1 = arith.constant 0 : i32
    %c0_i32_2 = arith.constant 0 : i32
    return %arg0, %c0_i32, %c0_i32_0, %c0_i32_1 : i32, i32, i32, i32
  }
}

</mosaic_0001>

<llo_original>
// kernel: tpu_custom_call.1
$region0: #{tpu_custom_call.1}
  #allocation0 [shape = 'u32[]', space=smem, size = 0x4, offset = 0x4, fixed_abs, tag = 'smem constant byte address 0x4 - core index']
  #allocation1 [shape = 'u32[72,128]{1,0:T(1,128)}', space=vmem, size = 0x9000, scoped, tag = 'internal scratch']
  %s0 = inlined_call_operand.hbm [shape: f32[16,128], index: 0, kind: input, shape index: {}]
  %s1 = inlined_call_operand.hbm [shape: f32[16,128], index: 1, kind: input, shape index: {}]
  %s2 = inlined_call_operand.hbm [shape: f32[2,5,8,128], index: 2, kind: output, shape index: {}]
  %s3 = sld [smem:[#allocation0]]
  $region53: #{tpu_custom_call.1} parent=0
    _
  %s5 = ssub.s32 1, %s3
  %s6 = scalar_select 0, %s5, %s3
  $region1: #{tpu_custom_call.1} parent=0
    #allocation2 [shape = 'u8[8192]{0}', space=vmem, size = 0x2000, scoped, tag = 'input window, operand 0']
    #allocation3 [shape = 's32[2]{0}', space=sflag, size = 0x8, scoped, tag = 'scoped memory for tpu_custom_call.1']
    #allocation4 [shape = 's32[2]{0}', space=sflag, size = 0x8, scoped, tag = 'scoped memory for tpu_custom_call.1']
    #allocation5 [shape = 'u8[8192]{0}', space=vmem, size = 0x2000, scoped, tag = 'input window, operand 1']
    #allocation6 [shape = 's32[2]{0}', space=sflag, size = 0x8, scoped, tag = 'scoped memory for tpu_custom_call.1']
    #allocation7 [shape = 'u8[40960]{0}', space=vmem, size = 0xa000, scoped, tag = 'output window, operand 0']
    %7 = vsyncpa [#allocation3], 0
    %s8 = scalar_lea.sflag [#allocation3], 1
    %9 = vsyncpa %s8, 0
    %10 = vsyncpa [#allocation6], 0
    %s11 = scalar_lea.sflag [#allocation6], 1
    %12 = vsyncpa %s11, 0
    %13 = vsyncpa [#allocation4], 0
    %s14 = scalar_lea.sflag [#allocation4], 1
    %15 = vsyncpa %s14, 0
    loop: start=0, step=1, limit=4
    $region2: #{tpu_custom_call.1} parent=1 // loop_pre_header
      _
    $region3: #{tpu_custom_call.1} parent=1 // loop_header
      %s17 = sphi 0, %s21
      %p18 = scmp.ge.s32.totalorder %s17, 4
      %s24 = sphi 0, %s36
      %s25 = sphi 0, %s32
      %s26 = sphi 0, %s24
      %s27 = sphi 0, %s25
      %s28 = sphi 0, %s26
      %s29 = sphi 0, %s27
      %s41 = sphi 0, %s43
      %s44 = sphi 0, %s41
      %s45 = sphi 0, %s44
      %s61 = sphi 0, %s45
      %s69 = sphi 0, %s71
      %s72 = sphi 0, %s69
      %s73 = sphi 0, %s72
      %s89 = sphi 0, %s73
      %s95 = sphi 0, %s97
      %s98 = sphi 0, %s95
      %s99 = sphi 0, %s98
      %s115 = sphi 0, %s99
    $region4: #{tpu_custom_call.1} parent=1 // loop_header_branch
      %20 = sbr.rel (%p18) target = $region8
    $region5: #{tpu_custom_call.1} parent=1 // loop_body
      %s22 = ssub.s32 %s17, 1
      %s23 = ssub.s32 %s17, 2
      %s30 = sadd.s32 1, %s25
      %p31 = scmp.ge.s32.totalorder %s30, 1
      %s32 = scalar_select %p31, 0, %s30
      %s33 = sadd.s32 1, %s24
      %s34 = scalar_select %p31, %s33, %s24
      %p35 = scmp.ge.s32.totalorder %s34, 2
      %s36 = scalar_select %p35, 0, %s34
      %s37 = sadd.s32 %s24, %s25
      %s38 = sadd.s32 %s36, %s32
      %s39 = ssub.s32 %s37, %s38
      %p40 = scmp.eq.s32.totalorder %s39, 0
      %s42 = sadd.s32 %s41, 1
      %s43 = scalar_select %p40, %s41, %s42
      %p46 = pneg %p40
      %p47 = scmp.eq.s32.totalorder %s17, 1
      %p48 = por %p46, %p47
      %p49 = scmp.ne.s32.totalorder %s41, %s44
      %p50 = scmp.eq.s32.totalorder %s17, 0
      %p51 = por %p49, %p50
      %p52 = scmp.ne.s32.totalorder %s41, %s44
      %p53 = scmp.eq.s32.totalorder %s22, 1
      %p54 = por %p52, %p53
      %p55 = scmp.ne.s32.totalorder %s44, %s45
      %p56 = scmp.eq.s32.totalorder %s22, 0
      %p57 = por %p55, %p56
      %p58 = scmp.ne.s32.totalorder %s44, %s45
      %p59 = scmp.eq.s32.totalorder %s23, 1
      %p60 = por %p58, %p59
      %p62 = scmp.ne.s32.totalorder %s45, %s61
      %p63 = scmp.eq.s32.totalorder %s23, 0
      %p64 = por %p62, %p63
      %s65 = sadd.s32 %s24, %s25
      %s66 = sadd.s32 %s36, %s32
      %s67 = ssub.s32 %s65, %s66
      %p68 = scmp.eq.s32.totalorder %s67, 0
      %s70 = sadd.s32 %s69, 1
      %s71 = scalar_select %p68, %s69, %s70
      %p74 = pneg %p68
      %p75 = scmp.eq.s32.totalorder %s17, 1
      %p76 = por %p74, %p75
      %p77 = scmp.ne.s32.totalorder %s69, %s72
      %p78 = scmp.eq.s32.totalorder %s17, 0
      %p79 = por %p77, %p78
      %p80 = scmp.ne.s32.totalorder %s69, %s72
      %p81 = scmp.eq.s32.totalorder %s22, 1
      %p82 = por %p80, %p81
      %p83 = scmp.ne.s32.totalorder %s72, %s73
      %p84 = scmp.eq.s32.totalorder %s22, 0
      %p85 = por %p83, %p84
      %p86 = scmp.ne.s32.totalorder %s72, %s73
      %p87 = scmp.eq.s32.totalorder %s23, 1
      %p88 = por %p86, %p87
      %p90 = scmp.ne.s32.totalorder %s73, %s89
      %p91 = scmp.eq.s32.totalorder %s23, 0
      %p92 = por %p90, %p91
      %s93 = ssub.s32 %s24, %s36
      %p94 = scmp.eq.s32.totalorder %s93, 0
      %s96 = sadd.s32 %s95, 1
      %s97 = scalar_select %p94, %s95, %s96
      %p100 = pneg %p94
      %p101 = scmp.eq.s32.totalorder %s17, 1
      %p102 = por %p100, %p101
      %p103 = scmp.ne.s32.totalorder %s95, %s98
      %p104 = scmp.eq.s32.totalorder %s17, 0
      %p105 = por %p103, %p104
      %p106 = scmp.ne.s32.totalorder %s95, %s98
      %p107 = scmp.eq.s32.totalorder %s22, 1
      %p108 = por %p106, %p107
      %p109 = scmp.ne.s32.totalorder %s98, %s99
      %p110 = scmp.eq.s32.totalorder %s22, 0
      %p111 = por %p109, %p110
      %p112 = scmp.ne.s32.totalorder %s98, %s99
      %p113 = scmp.eq.s32.totalorder %s23, 1
      %p114 = por %p112, %p113
      %p116 = scmp.ne.s32.totalorder %s99, %s115
      %p117 = scmp.eq.s32.totalorder %s23, 0
      %p118 = por %p116, %p117
      %p119 = scmp.le.s32.totalorder 1, %s17
      %p120 = scmp.lt.s32.totalorder %s17, 3
      %p121 = pnand %p119, %p120
      %p122 = pneg %p121
      // Predicated region
      $region9: #{tpu_custom_call.1} parent=5 // pred_check
        _
      $region10: #{tpu_custom_call.1} parent=5 // pred_check_branch
        %124 = sbr.rel (%p121) target = $region12
      $region11: #{tpu_custom_call.1} parent=5 // pred_region
        %s125 = ssub.s32 %s17, 1
      $region12: #{tpu_custom_call.1} parent=5 // pred_fallthru
        _
      %p126 = scmp.lt.s32.totalorder %s17, 2
      // Predicated region
      $region13: #{tpu_custom_call.1} parent=5 // pred_check
        %p127 = pneg %p126
      $region14: #{tpu_custom_call.1} parent=5 // pred_check_branch
        %129 = sbr.rel (%p127) target = $region16
      $region15: #{tpu_custom_call.1} parent=5 // pred_region
        // Predicated region
        $region17: #{tpu_custom_call.1} parent=15 // pred_check
          %p130 = pneg %p51
        $region18: #{tpu_custom_call.1} parent=15 // pred_check_branch
          %132 = sbr.rel (%p130) target = $region20
        $region19: #{tpu_custom_call.1} parent=15 // pred_region
          %s133 = sand.u32 %s41, 1
          %s134 = scalar_lea.sflag [#allocation3], %s133
          %s135 = sand.u32 %s41, 1
          %s136 = smul.addr %s135, 8
          %s137 = scalar_lea.vmem [#allocation2], %s136
          %s138 = sadd.s32 %s24, %s25
          %140 = vsyncadd %s134, 0
          %s141 = smul.addr %s138, 8
          %s142 = scalar_lea.hbm %s0, %s141
          %s144 = sshll.u32 %s142, 4
          %s145 = int_to_ptr.hbm [resolvable:$true] %s144
          %s146 = sshll.u32 %s137, 4
          %s147 = int_to_ptr.vmem [resolvable:$true] %s146
          %149 = dma.hbm_to_vmem [thread:$0]  %s145, 128, %s147, %s134
        $region20: #{tpu_custom_call.1} parent=15 // pred_fallthru
          _
        // Predicated region
        $region21: #{tpu_custom_call.1} parent=15 // pred_check
          %p150 = pneg %p79
        $region22: #{tpu_custom_call.1} parent=15 // pred_check_branch
          %152 = sbr.rel (%p150) target = $region24
        $region23: #{tpu_custom_call.1} parent=15 // pred_region
          %s153 = sand.u32 %s69, 1
          %s154 = scalar_lea.sflag [#allocation6], %s153
          %s155 = sand.u32 %s69, 1
          %s156 = smul.addr %s155, 8
          %s157 = scalar_lea.vmem [#allocation5], %s156
          %s158 = sadd.s32 %s24, %s25
          %160 = vsyncadd %s154, 0
          %s161 = smul.addr %s158, 8
          %s162 = scalar_lea.hbm %s1, %s161
          %s164 = sshll.u32 %s162, 4
          %s165 = int_to_ptr.hbm [resolvable:$true] %s164
          %s166 = sshll.u32 %s157, 4
          %s167 = int_to_ptr.vmem [resolvable:$true] %s166
          %169 = dma.hbm_to_vmem [thread:$0]  %s165, 128, %s167, %s154
        $region24: #{tpu_custom_call.1} parent=15 // pred_fallthru
          _
      $region16: #{tpu_custom_call.1} parent=5 // pred_fallthru
        _
      %p170 = scmp.le.s32.totalorder 1, %s17
      %p171 = scmp.lt.s32.totalorder %s17, 3
      %p172 = pnand %p170, %p171
      %p173 = pneg %p172
      // Predicated region
      $region25: #{tpu_custom_call.1} parent=5 // pred_check
        _
      $region26: #{tpu_custom_call.1} parent=5 // pred_check_branch
        %175 = sbr.rel (%p172) target = $region28
      $region27: #{tpu_custom_call.1} parent=5 // pred_region
        %s176 = ssub.s32 %s17, 1
        %s177 = sand.u32 %s44, 1
        %s178 = scalar_lea.sflag [#allocation3], %s177
        %s179 = sand.u32 %s44, 1
        %s180 = smul.addr %s179, 8
        %s181 = scalar_lea.vmem [#allocation2], %s180
        // Predicated region
        $region29: #{tpu_custom_call.1} parent=27 // pred_check
          %p182 = pneg %p57
        $region30: #{tpu_custom_call.1} parent=27 // pred_check_branch
          %184 = sbr.rel (%p182) target = $region32
        $region31: #{tpu_custom_call.1} parent=27 // pred_region
          %186 = dma.done %s178, 128
        $region32: #{tpu_custom_call.1} parent=27 // pred_fallthru
          _
        %s187 = sand.u32 %s72, 1
        %s188 = scalar_lea.sflag [#allocation6], %s187
        %s189 = sand.u32 %s72, 1
        %s190 = smul.addr %s189, 8
        %s191 = scalar_lea.vmem [#allocation5], %s190
        // Predicated region
        $region33: #{tpu_custom_call.1} parent=27 // pred_check
          %p192 = pneg %p85
        $region34: #{tpu_custom_call.1} parent=27 // pred_check_branch
          %194 = sbr.rel (%p192) target = $region36
        $region35: #{tpu_custom_call.1} parent=27 // pred_region
          %196 = dma.done %s188, 128
        $region36: #{tpu_custom_call.1} parent=27 // pred_fallthru
          _
        %s197 = sand.u32 %s44, 1
        %s198 = scalar_lea.sflag [#allocation3], %s197
        %s199 = sand.u32 %s44, 1
        %s200 = smul.addr %s199, 8
        %s201 = scalar_lea.vmem [#allocation2], %s200
        %p202 = pneg %p57
        %p203 = pneg %p54
        %s204 = sand.u32 %s72, 1
        %s205 = scalar_lea.sflag [#allocation6], %s204
        %s206 = sand.u32 %s72, 1
        %s207 = smul.addr %s206, 8
        %s208 = scalar_lea.vmem [#allocation5], %s207
        %p209 = pneg %p85
        %p210 = pneg %p82
        %p211 = pneg %p111
        %p212 = pneg %p108
        %s213 = sand.u32 %s98, 1
        %s214 = scalar_lea.sflag [#allocation4], %s213
        %s215 = sand.u32 %s98, 1
        %s216 = smul.addr %s215, 40
        %s217 = scalar_lea.vmem [#allocation7], %s216
        %s218 = sadd.s32 %s26, %s27
        %s219 = sadd.s32 %s26, %s27
        %p220 = scmp.eq.s32.totalorder %s27, 0
        // Predicated region
        $region37: #{tpu_custom_call.1} parent=27 // pred_check
          %p221 = pneg %p220
        $region38: #{tpu_custom_call.1} parent=27 // pred_check_branch
          %223 = sbr.rel (%p221) target = $region40
        $region39: #{tpu_custom_call.1} parent=27 // pred_region
          %224 = vst [vmem:[%s217] sm:$0xff] 0.0
          %225 = vst [vmem:[%s217 + $0x8] sm:$0xff] 0.0
          %226 = vst [vmem:[%s217 + $0x10] sm:$0xff] 0.0
          %227 = vst [vmem:[%s217 + $0x18] sm:$0xff] 0.0
          %228 = vst [vmem:[%s217 + $0x20] sm:$0xff] 0.0
        $region40: #{tpu_custom_call.1} parent=27 // pred_fallthru
          _
        %v229 = vld [vmem:[%s181] sm:$0xff]
        %v230 = vld [vmem:[%s191] sm:$0xff]
        %v231 = vld [vmem:[%s217] sm:$0xff]
        %v232 = vadd.f32 %v229, 0.0
        %v233 = vadd.f32 %v231, %v232
        %234 = vst [vmem:[%s217] sm:$0xff] %v233
        %s235 = scalar_lea.vmem %s217, 8 [#allocation7]
        %v236 = vld [vmem:[%s235] sm:$0xff]
        %v237 = vadd.f32 %v230, 0.0
        %v238 = vadd.f32 %v236, %v237
        %239 = vst [vmem:[%s235] sm:$0xff] %v238
        %s240 = scalar_lea.vmem %s217, 16 [#allocation7]
        %v241 = vld [vmem:[%s240] sm:$0xff]
        %v242 = vmul.f32 %v229, %v229
        %v243 = vadd.f32 %v242, 0.0
        %v244 = vadd.f32 %v241, %v243
        %245 = vst [vmem:[%s240] sm:$0xff] %v244
        %s246 = scalar_lea.vmem %s217, 24 [#allocation7]
        %v247 = vld [vmem:[%s246] sm:$0xff]
        %v248 = vmul.f32 %v230, %v230
        %v249 = vadd.f32 %v248, 0.0
        %v250 = vadd.f32 %v247, %v249
        %251 = vst [vmem:[%s246] sm:$0xff] %v250
        %s252 = scalar_lea.vmem %s217, 32 [#allocation7]
        %v253 = vld [vmem:[%s252] sm:$0xff]
        %v254 = vmul.f32 %v229, %v230
        %v255 = vadd.f32 %v254, 0.0
        %v256 = vadd.f32 %v253, %v255
        %257 = vst [vmem:[%s252] sm:$0xff] %v256
        %s258 = sand.u32 %s98, 1
        %s259 = scalar_lea.sflag [#allocation4], %s258
        %s260 = sand.u32 %s98, 1
        %s261 = smul.addr %s260, 40
        %s262 = scalar_lea.vmem [#allocation7], %s261
        // Predicated region
        $region41: #{tpu_custom_call.1} parent=27 // pred_check
          %p263 = pneg %p108
        $region42: #{tpu_custom_call.1} parent=27 // pred_check_branch
          %265 = sbr.rel (%p263) target = $region44
        $region43: #{tpu_custom_call.1} parent=27 // pred_region
          %267 = vsyncadd %s259, 0
          %s268 = smul.addr %s26, 5
          %s269 = smul.addr %s268, 8
          %s270 = scalar_lea.hbm %s2, %s269
          %s271 = sshll.u32 %s262, 4
          %s272 = int_to_ptr.vmem [resolvable:$true] %s271
          %s273 = sshll.u32 %s270, 4
          %s274 = int_to_ptr.hbm [resolvable:$true] %s273
          %279 = dma.vmem_to_hbm [thread:$0]  %s272, 640, %s274, %s259, 128, 128, 8
        $region44: #{tpu_custom_call.1} parent=27 // pred_fallthru
          _
      $region28: #{tpu_custom_call.1} parent=5 // pred_fallthru
        _
      %p280 = scmp.le.s32.totalorder 2, %s17
      // Predicated region
      $region45: #{tpu_custom_call.1} parent=5 // pred_check
        %p281 = pneg %p280
      $region46: #{tpu_custom_call.1} parent=5 // pred_check_branch
        %283 = sbr.rel (%p281) target = $region48
      $region47: #{tpu_custom_call.1} parent=5 // pred_region
        %s284 = ssub.s32 %s17, 2
        // Predicated region
        $region49: #{tpu_custom_call.1} parent=47 // pred_check
          %p285 = pneg %p114
        $region50: #{tpu_custom_call.1} parent=47 // pred_check_branch
          %287 = sbr.rel (%p285) target = $region52
        $region51: #{tpu_custom_call.1} parent=47 // pred_region
          %s288 = sand.u32 %s99, 1
          %s289 = scalar_lea.sflag [#allocation4], %s288
          %s290 = sand.u32 %s99, 1
          %s291 = smul.addr %s290, 40
          %s292 = scalar_lea.vmem [#allocation7], %s291
          %294 = dma.done %s289, 640
        $region52: #{tpu_custom_call.1} parent=47 // pred_fallthru
          _
      $region48: #{tpu_custom_call.1} parent=5 // pred_fallthru
        _
    $region6: #{tpu_custom_call.1} parent=1 // loop_footer
      %s21 = sadd.s32 1, %s17
    $region7: #{tpu_custom_call.1} parent=1 // loop_footer_branch
      %16 = sbr.rel target = $region3
    $region8: #{tpu_custom_call.1} parent=1 // loop_exit
      _
    %295 = vsyncpa [#allocation3], 1
    %s296 = scalar_lea.sflag [#allocation3], 1
    %297 = vsyncpa %s296, 1
    %298 = vsyncpa [#allocation6], 1
    %s299 = scalar_lea.sflag [#allocation6], 1
    %300 = vsyncpa %s299, 1
    %301 = vsyncpa [#allocation4], 1
    %s302 = scalar_lea.sflag [#allocation4], 1
    %303 = vsyncpa %s302, 1

</llo_original>
